<compile_context>
chip_gen: v6e
topology: v6e:2x2x1
jax: 0.10.0
libtpu: 0.0.40
codegen_flags: <defaults>
</compile_context>

<pallas_src>
import functools

import jax
import jax.numpy as jnp
from jax import lax
from jax.experimental import pallas as pl
from jax.experimental.pallas import tpu as pltpu


# ----------------------------------------------------------------------------
# Fused kernel: conv2d + bias + ReLU + BatchNorm (batch stats) in one shot.
#   x_ref     : (N, Hp, Wp*Cin)       padded input, (W,Cin) folded onto lanes
#   w_ref     : (KH, Wp*Cin, OW*Cout) width-Toeplitz weight
#   b_ref     : (1, OW*Cout)          bias tiled over OW
#   gamma_ref : (1, OW*Cout)          BN gamma tiled over OW
#   beta_ref  : (1, OW*Cout)          BN beta tiled over OW
#   g_ref     : (OW*Cout, OW*Cout)    channel-group matrix (sum over OW + bcast)
#   o_ref     : (N*OH, OW*Cout)       normalized output, lane-dense
# ----------------------------------------------------------------------------
def _conv_block_kernel(x_ref, w_ref, b_ref, gamma_ref, beta_ref, g_ref, o_ref,
                       *, N, KH, OH, stride, eps, count):
    span = (OH - 1) * stride + 1
    bands = [x_ref[n] for n in range(N)]              # each (Hp, Wp*Cin), resident

    # One MXU matmul per kernel row; K = Wp*Cin, M = N*OH (batch folded into M).
    acc = None
    for kh in range(KH):
        lhs = jnp.concatenate([b[kh:kh + span:stride, :] for b in bands],
                              axis=0)                 # (N*OH, Wp*Cin)
        part = jnp.dot(lhs, w_ref[kh], preferred_element_type=jnp.float32)
        acc = part if acc is None else acc + part

    acc = jnp.maximum(acc + b_ref[...], 0.0)          # bias + ReLU, (N*OH, OWC)

    # BatchNorm with training-mode (biased) batch statistics, all in-kernel.
    inv_cnt = jnp.float32(1.0 / count)
    row_sum = jnp.sum(acc, axis=0, keepdims=True)                       # (1, OWC)
    mean = jnp.dot(row_sum, g_ref[...],
                   preferred_element_type=jnp.float32) * inv_cnt        # per-ch, lane-bcast
    d = acc - mean                                                      # shifted (stable var)
    row_ssq = jnp.sum(d * d, axis=0, keepdims=True)
    var = jnp.dot(row_ssq, g_ref[...],
                  preferred_element_type=jnp.float32) * inv_cnt
    scale = gamma_ref[...] * lax.rsqrt(var + eps)                       # EUP rsqrt
    o_ref[...] = d * scale + beta_ref[...]


@functools.partial(jax.jit, static_argnames=("stride", "eps"))
def conv_block_forward(x_nchw, weight_oihw, bias, gamma, beta, *, stride,
                       eps=1e-5):
    """ConvBlock forward. x_nchw: (N, Cin, H, W) f32. Returns (N, Cout, OH, OW)."""
    N, Cin, H, W = x_nchw.shape
    Cout, _, KH, KW = weight_oihw.shape
    pad = (KH - 1) // 2
    OH = (H + 2 * pad - KH) // stride + 1
    OW = (W + 2 * pad - KW) // stride + 1
    Hp, Wp = H + 2 * pad, W + 2 * pad
    WPC = Wp * Cin
    OWC = OW * Cout

    # ---- boundary layout glue (kept minimal; constant work for the weights) ----
    # NOTE: the NCHW<->lane-folded transposes below are pure boundary relayouts;
    # they disappear if the surrounding model keeps NHWC end-to-end.
    x_nhwc = jnp.transpose(x_nchw, (0, 2, 3, 1)).astype(jnp.float32)
    x_pad = jnp.pad(x_nhwc, ((0, 0), (pad, pad), (pad, pad), (0, 0)))
    x_flat = x_pad.reshape(N, Hp, WPC)                # fold (W, Cin) onto lanes

    w_hwio = jnp.transpose(weight_oihw, (2, 3, 1, 0)).astype(jnp.float32)  # (KH,KW,Cin,Cout)
    # Width-Toeplitz weight: w_toep[kh, w*Cin+c, ow*Cout+co] = w[kh, w-ow*stride, c, co]
    sel = (jnp.arange(Wp)[None, :, None] ==
           (jnp.arange(OW)[None, None, :] * stride +
            jnp.arange(KW)[:, None, None])).astype(jnp.float32)            # (KW,Wp,OW)
    w_toep = jnp.einsum("hkco,kwq->hwcqo", w_hwio, sel).reshape(KH, WPC, OWC)

    b_t = jnp.tile(bias.astype(jnp.float32), OW).reshape(1, OWC)
    gamma_t = jnp.tile(gamma.astype(jnp.float32), OW).reshape(1, OWC)
    beta_t = jnp.tile(beta.astype(jnp.float32), OW).reshape(1, OWC)
    # Channel-group matrix: sums over OW and re-broadcasts per-channel to every lane.
    ch = jnp.arange(OWC, dtype=jnp.int32) % Cout
    g_mat = (ch[:, None] == ch[None, :]).astype(jnp.float32)               # (OWC, OWC)

    kernel = functools.partial(_conv_block_kernel, N=N, KH=KH, OH=OH,
                               stride=stride, eps=eps, count=N * OH * OW)

    out2d = pl.pallas_call(
        kernel,
        out_shape=jax.ShapeDtypeStruct((N * OH, OWC), jnp.float32),
        grid_spec=pltpu.PrefetchScalarGridSpec(
            num_scalar_prefetch=0,
            grid=(1,),
            in_specs=[
                pl.BlockSpec((N, Hp, WPC), lambda i: (0, 0, 0)),
                pl.BlockSpec((KH, WPC, OWC), lambda i: (0, 0, 0)),
                pl.BlockSpec((1, OWC), lambda i: (0, 0)),
                pl.BlockSpec((1, OWC), lambda i: (0, 0)),
                pl.BlockSpec((1, OWC), lambda i: (0, 0)),
                pl.BlockSpec((OWC, OWC), lambda i: (0, 0)),
            ],
            out_specs=pl.BlockSpec((N * OH, OWC), lambda i: (0, 0))),
        compiler_params=pltpu.CompilerParams(
            dimension_semantics=("arbitrary",)),
    )(x_flat, w_toep, b_t, gamma_t, beta_t, g_mat)

    return jnp.transpose(out2d.reshape(N, OH, OW, Cout), (0, 3, 1, 2))


def _reference(x_nchw, weight_oihw, bias, gamma, beta, *, stride, eps=1e-5):
    """Pure-JAX reference (lax.conv) for a correctness sanity check."""
    pad = (weight_oihw.shape[2] - 1) // 2
    out = lax.conv_general_dilated(
        x_nchw, weight_oihw, window_strides=(stride, stride),
        padding=((pad, pad), (pad, pad)),
        dimension_numbers=("NCHW", "OIHW", "NCHW"))
    out = out + bias.reshape(1, -1, 1, 1)
    out = jnp.maximum(out, 0.0)
    mean = jnp.mean(out, axis=(0, 2, 3), keepdims=True)
    var = jnp.mean((out - mean) ** 2, axis=(0, 2, 3), keepdims=True)
    out = (out - mean) / jnp.sqrt(var + eps)
    return out * gamma.reshape(1, -1, 1, 1) + beta.reshape(1, -1, 1, 1)


if __name__ == "__main__":
    # ConvBlock(in_channel=4, out_channel=8, kernel_size=3, stride=1),
    # x of shape (2, 4, 16, 16).
    N, Cin, H, W = 2, 4, 16, 16
    Cout, K, stride = 8, 3, 1

    key = jax.random.PRNGKey(0)
    kx, kw, kb, kg, kbeta = jax.random.split(key, 5)
    x = jax.random.normal(kx, (N, Cin, H, W), jnp.float32)
    weight = jax.random.normal(kw, (Cout, Cin, K, K), jnp.float32) * 0.1
    bias = jax.random.normal(kb, (Cout,), jnp.float32) * 0.1
    gamma = jnp.ones((Cout,), jnp.float32) + 0.1 * jax.random.normal(
        kg, (Cout,), jnp.float32)
    beta = 0.1 * jax.random.normal(kbeta, (Cout,), jnp.float32)

    out = conv_block_forward(x, weight, bias, gamma, beta, stride=stride)
    out = jax.block_until_ready(out)

    ref = _reference(x, weight, bias, gamma, beta, stride=stride)
    assert out.shape == (N, Cout, H, W)
    err = float(jnp.max(jnp.abs(out - ref)))
    assert err < 1e-3, f"mismatch vs pure-JAX reference: {err}"

    print("KERNEL_OK")
</pallas_src>

<mosaic_0001>
module attributes {stable_mosaic.version = 11 : i64} {
  func.func @_conv_block_kernel(%arg0: i32, %arg1: memref<2x18x72xf32, #tpu.memory_space<vmem>>, %arg2: memref<3x72x128xf32, #tpu.memory_space<vmem>>, %arg3: memref<1x128xf32, #tpu.memory_space<vmem>>, %arg4: memref<1x128xf32, #tpu.memory_space<vmem>>, %arg5: memref<1x128xf32, #tpu.memory_space<vmem>>, %arg6: memref<128x128xf32, #tpu.memory_space<vmem>>, %arg7: memref<32x128xf32, #tpu.memory_space<vmem>>) attributes {dimension_semantics = [#tpu.dimension_semantics<arbitrary>], iteration_bounds = array<i64: 1>, scalar_prefetch = 0 : i64, scratch_operands = 0 : i64, tpu.core_type = #tpu.core_type<tc>, window_params = [{pipeline_mode = #tpu.pipeline_mode<synchronous>, transform_indices = @transform_0, window_bounds = array<i64: 2, 18, 72>}, {pipeline_mode = #tpu.pipeline_mode<synchronous>, transform_indices = @transform_1, window_bounds = array<i64: 3, 72, 128>}, {pipeline_mode = #tpu.pipeline_mode<synchronous>, transform_indices = @transform_2, window_bounds = array<i64: 1, 128>}, {pipeline_mode = #tpu.pipeline_mode<synchronous>, transform_indices = @transform_3, window_bounds = array<i64: 1, 128>}, {pipeline_mode = #tpu.pipeline_mode<synchronous>, transform_indices = @transform_4, window_bounds = array<i64: 1, 128>}, {pipeline_mode = #tpu.pipeline_mode<synchronous>, transform_indices = @transform_5, window_bounds = array<i64: 128, 128>}, {pipeline_mode = #tpu.pipeline_mode<synchronous>, transform_indices = @transform_6, window_bounds = array<i64: 32, 128>}]} {
    %c0 = arith.constant 0 : index
    %c0_0 = arith.constant 0 : index
    %c0_1 = arith.constant 0 : index
    %0 = vector.load %arg1[%c0, %c0_0, %c0_1] : memref<2x18x72xf32, #tpu.memory_space<vmem>>, vector<1x18x72xf32>
    %1 = vector.shape_cast %0 : vector<1x18x72xf32> to vector<18x72xf32>
    %c1 = arith.constant 1 : index
    %c0_2 = arith.constant 0 : index
    %c0_3 = arith.constant 0 : index
    %2 = vector.load %arg1[%c1, %c0_2, %c0_3] : memref<2x18x72xf32, #tpu.memory_space<vmem>>, vector<1x18x72xf32>
    %3 = vector.shape_cast %2 : vector<1x18x72xf32> to vector<18x72xf32>
    %4 = vector.extract_strided_slice %1 {offsets = [0, 0], sizes = [16, 72], strides = [1, 1]} : vector<18x72xf32> to vector<16x72xf32>
    %5 = vector.extract_strided_slice %3 {offsets = [0, 0], sizes = [16, 72], strides = [1, 1]} : vector<18x72xf32> to vector<16x72xf32>
    %6 = tpu.concatenate %4, %5 in 0 : vector<16x72xf32>, vector<16x72xf32> -> vector<32x72xf32>
    %c0_4 = arith.constant 0 : index
    %c0_5 = arith.constant 0 : index
    %c0_6 = arith.constant 0 : index
    %7 = vector.load %arg2[%c0_4, %c0_5, %c0_6] : memref<3x72x128xf32, #tpu.memory_space<vmem>>, vector<1x72x128xf32>
    %8 = vector.shape_cast %7 : vector<1x72x128xf32> to vector<72x128xf32>
    %cst = arith.constant dense<0.000000e+00> : vector<32x128xf32>
    %9 = tpu.matmul %6, %8, %cst {dimension_numbers = #tpu.dot_dimension_numbers<[1], [0], [0], [1], [0, 0, 1, 1], [], []>} : vector<32x72xf32>, vector<72x128xf32>, vector<32x128xf32> -> vector<32x128xf32>
    %10 = vector.extract_strided_slice %1 {offsets = [1, 0], sizes = [16, 72], strides = [1, 1]} : vector<18x72xf32> to vector<16x72xf32>
    %11 = vector.extract_strided_slice %3 {offsets = [1, 0], sizes = [16, 72], strides = [1, 1]} : vector<18x72xf32> to vector<16x72xf32>
    %12 = tpu.concatenate %10, %11 in 0 : vector<16x72xf32>, vector<16x72xf32> -> vector<32x72xf32>
    %c1_7 = arith.constant 1 : index
    %c0_8 = arith.constant 0 : index
    %c0_9 = arith.constant 0 : index
    %13 = vector.load %arg2[%c1_7, %c0_8, %c0_9] : memref<3x72x128xf32, #tpu.memory_space<vmem>>, vector<1x72x128xf32>
    %14 = vector.shape_cast %13 : vector<1x72x128xf32> to vector<72x128xf32>
    %cst_10 = arith.constant dense<0.000000e+00> : vector<32x128xf32>
    %15 = tpu.matmul %12, %14, %cst_10 {dimension_numbers = #tpu.dot_dimension_numbers<[1], [0], [0], [1], [0, 0, 1, 1], [], []>} : vector<32x72xf32>, vector<72x128xf32>, vector<32x128xf32> -> vector<32x128xf32>
    %16 = arith.addf %9, %15 : vector<32x128xf32>
    %17 = vector.extract_strided_slice %1 {offsets = [2, 0], sizes = [16, 72], strides = [1, 1]} : vector<18x72xf32> to vector<16x72xf32>
    %18 = vector.extract_strided_slice %3 {offsets = [2, 0], sizes = [16, 72], strides = [1, 1]} : vector<18x72xf32> to vector<16x72xf32>
    %19 = tpu.concatenate %17, %18 in 0 : vector<16x72xf32>, vector<16x72xf32> -> vector<32x72xf32>
    %c2 = arith.constant 2 : index
    %c0_11 = arith.constant 0 : index
    %c0_12 = arith.constant 0 : index
    %20 = vector.load %arg2[%c2, %c0_11, %c0_12] : memref<3x72x128xf32, #tpu.memory_space<vmem>>, vector<1x72x128xf32>
    %21 = vector.shape_cast %20 : vector<1x72x128xf32> to vector<72x128xf32>
    %cst_13 = arith.constant dense<0.000000e+00> : vector<32x128xf32>
    %22 = tpu.matmul %19, %21, %cst_13 {dimension_numbers = #tpu.dot_dimension_numbers<[1], [0], [0], [1], [0, 0, 1, 1], [], []>} : vector<32x72xf32>, vector<72x128xf32>, vector<32x128xf32> -> vector<32x128xf32>
    %23 = arith.addf %16, %22 : vector<32x128xf32>
    %c0_14 = arith.constant 0 : index
    %c0_15 = arith.constant 0 : index
    %24 = vector.load %arg3[%c0_14, %c0_15] : memref<1x128xf32, #tpu.memory_space<vmem>>, vector<1x128xf32>
    %25 = vector.broadcast %24 : vector<1x128xf32> to vector<32x128xf32>
    %26 = arith.addf %23, %25 : vector<32x128xf32>
    %cst_16 = arith.constant 0.000000e+00 : f32
    %27 = vector.broadcast %cst_16 : f32 to vector<32x128xf32>
    %28 = arith.maximumf %26, %27 : vector<32x128xf32>
    %cst_17 = arith.constant dense<0.000000e+00> : vector<128xf32>
    %29 = vector.multi_reduction <add>, %28, %cst_17 [0] : vector<32x128xf32> to vector<128xf32>
    %30 = vector.shape_cast %29 : vector<128xf32> to vector<1x128xf32>
    %c0_18 = arith.constant 0 : index
    %c0_19 = arith.constant 0 : index
    %31 = vector.load %arg6[%c0_18, %c0_19] : memref<128x128xf32, #tpu.memory_space<vmem>>, vector<128x128xf32>
    %cst_20 = arith.constant dense<0.000000e+00> : vector<1x128xf32>
    %32 = tpu.matmul %30, %31, %cst_20 {dimension_numbers = #tpu.dot_dimension_numbers<[1], [0], [0], [1], [0, 0, 1, 1], [], []>} : vector<1x128xf32>, vector<128x128xf32>, vector<1x128xf32> -> vector<1x128xf32>
    %cst_21 = arith.constant 0.001953125 : f32
    %33 = vector.broadcast %cst_21 : f32 to vector<1x128xf32>
    %34 = arith.mulf %32, %33 : vector<1x128xf32>
    %35 = vector.broadcast %34 : vector<1x128xf32> to vector<32x128xf32>
    %36 = arith.subf %28, %35 : vector<32x128xf32>
    %37 = arith.mulf %36, %36 : vector<32x128xf32>
    %cst_22 = arith.constant dense<0.000000e+00> : vector<128xf32>
    %38 = vector.multi_reduction <add>, %37, %cst_22 [0] : vector<32x128xf32> to vector<128xf32>
    %39 = vector.shape_cast %38 : vector<128xf32> to vector<1x128xf32>
    %c0_23 = arith.constant 0 : index
    %c0_24 = arith.constant 0 : index
    %40 = vector.load %arg6[%c0_23, %c0_24] : memref<128x128xf32, #tpu.memory_space<vmem>>, vector<128x128xf32>
    %cst_25 = arith.constant dense<0.000000e+00> : vector<1x128xf32>
    %41 = tpu.matmul %39, %40, %cst_25 {dimension_numbers = #tpu.dot_dimension_numbers<[1], [0], [0], [1], [0, 0, 1, 1], [], []>} : vector<1x128xf32>, vector<128x128xf32>, vector<1x128xf32> -> vector<1x128xf32>
    %cst_26 = arith.constant 0.001953125 : f32
    %42 = vector.broadcast %cst_26 : f32 to vector<1x128xf32>
    %43 = arith.mulf %41, %42 : vector<1x128xf32>
    %c0_27 = arith.constant 0 : index
    %c0_28 = arith.constant 0 : index
    %44 = vector.load %arg4[%c0_27, %c0_28] : memref<1x128xf32, #tpu.memory_space<vmem>>, vector<1x128xf32>
    %cst_29 = arith.constant 9.99999974E-6 : f32
    %45 = vector.broadcast %cst_29 : f32 to vector<1x128xf32>
    %46 = arith.addf %43, %45 : vector<1x128xf32>
    %47 = math.rsqrt %46 : vector<1x128xf32>
    %48 = arith.mulf %44, %47 : vector<1x128xf32>
    %49 = vector.broadcast %48 : vector<1x128xf32> to vector<32x128xf32>
    %50 = arith.mulf %36, %49 : vector<32x128xf32>
    %c0_30 = arith.constant 0 : index
    %c0_31 = arith.constant 0 : index
    %51 = vector.load %arg5[%c0_30, %c0_31] : memref<1x128xf32, #tpu.memory_space<vmem>>, vector<1x128xf32>
    %52 = vector.broadcast %51 : vector<1x128xf32> to vector<32x128xf32>
    %53 = arith.addf %50, %52 : vector<32x128xf32>
    %c0_32 = arith.constant 0 : index
    %c0_33 = arith.constant 0 : index
    %54 = vector.load %arg7[%c0_32, %c0_33] : memref<32x128xf32, #tpu.memory_space<vmem>>, vector<32x128xf32>
    tpu.vector_store %arg7[%c0_32, %c0_33], %53 {strides = array<i32>} : memref<32x128xf32, #tpu.memory_space<vmem>>, vector<32x128xf32>,
    return
  }
  func.func @transform_0(%arg0: i32) -> (i32, i32, i32) {
    %c0_i32 = arith.constant 0 : i32
    %c0_i32_0 = arith.constant 0 : i32
    %c0_i32_1 = arith.constant 0 : i32
    %c0_i32_2 = arith.constant 0 : i32
    return %c0_i32, %c0_i32_0, %c0_i32_1 : i32, i32, i32
  }
  func.func @transform_1(%arg0: i32) -> (i32, i32, i32) {
    %c0_i32 = arith.constant 0 : i32
    %c0_i32_0 = arith.constant 0 : i32
    %c0_i32_1 = arith.constant 0 : i32
    %c0_i32_2 = arith.constant 0 : i32
    return %c0_i32, %c0_i32_0, %c0_i32_1 : i32, i32, i32
  }
  func.func @transform_2(%arg0: i32) -> (i32, i32) {
    %c0_i32 = arith.constant 0 : i32
    %c0_i32_0 = arith.constant 0 : i32
    %c0_i32_1 = arith.constant 0 : i32
    return %c0_i32, %c0_i32_0 : i32, i32
  }
  func.func @transform_3(%arg0: i32) -> (i32, i32) {
    %c0_i32 = arith.constant 0 : i32
    %c0_i32_0 = arith.constant 0 : i32
    %c0_i32_1 = arith.constant 0 : i32
    return %c0_i32, %c0_i32_0 : i32, i32
  }
  func.func @transform_4(%arg0: i32) -> (i32, i32) {
    %c0_i32 = arith.constant 0 : i32
    %c0_i32_0 = arith.constant 0 : i32
    %c0_i32_1 = arith.constant 0 : i32
    return %c0_i32, %c0_i32_0 : i32, i32
  }
  func.func @transform_5(%arg0: i32) -> (i32, i32) {
    %c0_i32 = arith.constant 0 : i32
    %c0_i32_0 = arith.constant 0 : i32
    %c0_i32_1 = arith.constant 0 : i32
    return %c0_i32, %c0_i32_0 : i32, i32
  }
  func.func @transform_6(%arg0: i32) -> (i32, i32) {
    %c0_i32 = arith.constant 0 : i32
    %c0_i32_0 = arith.constant 0 : i32
    %c0_i32_1 = arith.constant 0 : i32
    return %c0_i32, %c0_i32_0 : i32, i32
  }
}

</mosaic_0001>

<llo_original>
// kernel: tile.18
$region0: #{tile.18}
  #allocation0 [shape = 's32[1]{0}', space=sflag, size = 0x4, scoped, tag = 'scoped memory for tile.18']
  %s0 = inlined_call_operand.vmem [shape: f32[8], index: 0, kind: input, shape index: {}]
  %s1 = inlined_call_operand.vmem [shape: f32[16,8], index: 1, kind: output, shape index: {}]
  // Predicated region
  $region2: #{tile.18} parent=0 // pred_check
    _
  $region3: #{tile.18} parent=0 // pred_check_branch
    %3 = sbr.rel (0) target = $region5
  $region4: #{tile.18} parent=0 // pred_region
    _
  $region5: #{tile.18} parent=0 // pred_fallthru
    _
  %v4 = vld [vmem:[%s0] ss:$0 sm:$0xff]
  %5 = vst [vmem:[%s1] sm:$0xff] %v4
  %s6 = scalar_lea.vmem %s1, 8
  %7 = vst [vmem:[%s6] sm:$0xff] %v4

// kernel: tile.19
$region0: #{tile.19}
  %s0 = inlined_call_operand.vmem [shape: f32[16,8], index: 0, kind: input, shape index: {}]
  %s1 = inlined_call_operand.vmem [shape: f32[1,128], index: 1, kind: output, shape index: {}]
  $region1: #{tile.19} parent=0
    #allocation0 [shape = 'u8[4096]{0}', space=vmem, size = 0x1000, scoped, tag = 'scoped mem for output reshape']
    %v2 = vld [vmem:[%s0] sm:$0x1]
    %vm3 = vcmask 64512
    %4 = vst.msk [vmem:[#allocation0] sm:$0x1] %vm3, %v2
    %s5 = scalar_lea.vmem %s0, 15
    %v6 = vld [vmem:[%s5] sm:$0x1]
    %7 = vrot.lane.b32.xlu0 %v6, 120
    %v8 = vpop.permute.xlu0 %7
    %vm9 = vcmask 1048512
    %10 = vst.msk [vmem:[#allocation0] sm:$0x1] %vm9, %v8
    %s11 = scalar_lea.vmem %s0, 14
    %v12 = vld [vmem:[%s11] sm:$0x1]
    %13 = vrot.lane.b32.xlu0 %v12, 112
    %v14 = vpop.permute.xlu0 %13
    %vm15 = vcmask 982912
    %16 = vst.msk [vmem:[#allocation0] sm:$0x1] %vm15, %v14
    %s17 = scalar_lea.vmem %s0, 13
    %v18 = vld [vmem:[%s17] sm:$0x1]
    %19 = vrot.lane.b32.xlu0 %v18, 104
    %v20 = vpop.permute.xlu0 %19
    %vm21 = vcmask 917312
    %22 = vst.msk [vmem:[#allocation0] sm:$0x1] %vm21, %v20
    %s23 = scalar_lea.vmem %s0, 12
    %v24 = vld [vmem:[%s23] sm:$0x1]
    %25 = vrot.lane.b32.xlu0 %v24, 96
    %v26 = vpop.permute.xlu0 %25
    %vm27 = vcmask 851712
    %28 = vst.msk [vmem:[#allocation0] sm:$0x1] %vm27, %v26
    %s29 = scalar_lea.vmem %s0, 11
    %v30 = vld [vmem:[%s29] sm:$0x1]
    %31 = vrot.lane.b32.xlu0 %v30, 88
    %v32 = vpop.permute.xlu0 %31
    %vm33 = vcmask 786112
    %34 = vst.msk [vmem:[#allocation0] sm:$0x1] %vm33, %v32
    %s35 = scalar_lea.vmem %s0, 10
    %v36 = vld [vmem:[%s35] sm:$0x1]
    %37 = vrot.lane.b32.xlu0 %v36, 80
    %v38 = vpop.permute.xlu0 %37
    %vm39 = vcmask 720512
    %40 = vst.msk [vmem:[#allocation0] sm:$0x1] %vm39, %v38
    %s41 = scalar_lea.vmem %s0, 9
    %v42 = vld [vmem:[%s41] sm:$0x1]
    %43 = vrot.lane.b32.xlu0 %v42, 72
    %v44 = vpop.permute.xlu0 %43
    %vm45 = vcmask 654912
    %46 = vst.msk [vmem:[#allocation0] sm:$0x1] %vm45, %v44
    %s47 = scalar_lea.vmem %s0, 8
    %v48 = vld [vmem:[%s47] sm:$0x1]
    %49 = vrot.lane.b32.xlu0 %v48, 64
    %v50 = vpop.permute.xlu0 %49
    %vm51 = vcmask 589312
    %52 = vst.msk [vmem:[#allocation0] sm:$0x1] %vm51, %v50
    %s53 = scalar_lea.vmem %s0, 7
    %v54 = vld [vmem:[%s53] sm:$0x1]
    %55 = vrot.lane.b32.xlu0 %v54, 56
    %v56 = vpop.permute.xlu0 %55
    %vm57 = vcmask 523712
    %58 = vst.msk [vmem:[#allocation0] sm:$0x1] %vm57, %v56
    %s59 = scalar_lea.vmem %s0, 6
    %v60 = vld [vmem:[%s59] sm:$0x1]
    %61 = vrot.lane.b32.xlu0 %v60, 48
    %v62 = vpop.permute.xlu0 %61
    %vm63 = vcmask 458112
    %64 = vst.msk [vmem:[#allocation0] sm:$0x1] %vm63, %v62
    %s65 = scalar_lea.vmem %s0, 5
    %v66 = vld [vmem:[%s65] sm:$0x1]
    %67 = vrot.lane.b32.xlu0 %v66, 40
    %v68 = vpop.permute.xlu0 %67
    %vm69 = vcmask 392512
    %70 = vst.msk [vmem:[#allocation0] sm:$0x1] %vm69, %v68
    %s71 = scalar_lea.vmem %s0, 4
    %v72 = vld [vmem:[%s71] sm:$0x1]
    %73 = vrot.lane.b32.xlu0 %v72, 32
    %v74 = vpop.permute.xlu0 %73
    %vm75 = vcmask 326912
    %76 = vst.msk [vmem:[#allocation0] sm:$0x1] %vm75, %v74
    %s77 = scalar_lea.vmem %s0, 3
    %v78 = vld [vmem:[%s77] sm:$0x1]
    %79 = vrot.lane.b32.xlu0 %v78, 24
    %v80 = vpop.permute.xlu0 %79
    %vm81 = vcmask 261312
    %82 = vst.msk [vmem:[#allocation0] sm:$0x1] %vm81, %v80
    %s83 = scalar_lea.vmem %s0, 2
    %v84 = vld [vmem:[%s83] sm:$0x1]
    %85 = vrot.lane.b32.xlu0 %v84, 16
    %v86 = vpop.permute.xlu0 %85
    %vm87 = vcmask 195712
    %88 = vst.msk [vmem:[#allocation0] sm:$0x1] %vm87, %v86
    %s89 = scalar_lea.vmem %s0, 1
    %v90 = vld [vmem:[%s89] sm:$0x1]
    %91 = vrot.lane.b32.xlu0 %v90, 8
    %v92 = vpop.permute.xlu0 %91
    %vm93 = vcmask 130112
    %94 = vst.msk [vmem:[#allocation0] sm:$0x1] %vm93, %v92
    %s96 = sshll.u32 1, 1
    %s97 = ssub.s32 %s96, 1
    %v99 = vld [vmem:[#allocation0] sm:%s97]
    %s100 = sshll.u32 1, 1
    %s101 = ssub.s32 %s100, 1
    %102 = vst [vmem:[%s1] sm:%s101] %v99

// kernel: conv_block_forward.1
$region0: #{conv_block_forward.1}
  #allocation0 [shape = 'u32[]', space=smem, size = 0x4, offset = 0x4, fixed_abs, tag = 'smem constant byte address 0x4 - core index']
  #allocation1 [shape = 'u32[144,128]{1,0:T(1,128)}', space=vmem, size = 0x12000, scoped, tag = 'internal scratch']
  %s0 = inlined_call_operand.vmem [shape: f32[2,18,72], index: 0, kind: input, shape index: {}]
  %s1 = inlined_call_operand.vmem [shape: f32[3,72,128], index: 1, kind: input, shape index: {}]
  %s2 = inlined_call_operand.vmem [shape: f32[1,128], index: 2, kind: input, shape index: {}]
  %s3 = inlined_call_operand.vmem [shape: f32[1,128], index: 3, kind: input, shape index: {}]
  %s4 = inlined_call_operand.vmem [shape: f32[1,128], index: 4, kind: input, shape index: {}]
  %s5 = inlined_call_operand.vmem [shape: f32[128,128], index: 5, kind: input, shape index: {}]
  %s6 = inlined_call_operand.vmem [shape: f32[32,128], index: 6, kind: output, shape index: {}]
  %s7 = sld [smem:[#allocation0]]
  $region34: #{conv_block_forward.1} parent=0
    _
  %s9 = ssub.s32 1, %s7
  %s10 = scalar_select 0, %s9, %s7
  // Predicated region
  $region2: #{conv_block_forward.1} parent=0 // pred_check
    _
  $region3: #{conv_block_forward.1} parent=0 // pred_check_branch
    %12 = sbr.rel (0) target = $region5
  $region4: #{conv_block_forward.1} parent=0 // pred_region
    _
  $region5: #{conv_block_forward.1} parent=0 // pred_fallthru
    _
  // Predicated region
  $region6: #{conv_block_forward.1} parent=0 // pred_check
    _
  $region7: #{conv_block_forward.1} parent=0 // pred_check_branch
    %14 = sbr.rel (0) target = $region9
  $region8: #{conv_block_forward.1} parent=0 // pred_region
    _
  $region9: #{conv_block_forward.1} parent=0 // pred_fallthru
    _
  // Predicated region
  $region10: #{conv_block_forward.1} parent=0 // pred_check
    _
  $region11: #{conv_block_forward.1} parent=0 // pred_check_branch
    %16 = sbr.rel (0) target = $region13
  $region12: #{conv_block_forward.1} parent=0 // pred_region
    _
  $region13: #{conv_block_forward.1} parent=0 // pred_fallthru
    _
  // Predicated region
  $region14: #{conv_block_forward.1} parent=0 // pred_check
    _
  $region15: #{conv_block_forward.1} parent=0 // pred_check_branch
    %18 = sbr.rel (0) target = $region17
  $region16: #{conv_block_forward.1} parent=0 // pred_region
    _
  $region17: #{conv_block_forward.1} parent=0 // pred_fallthru
    _
  // Predicated region
  $region18: #{conv_block_forward.1} parent=0 // pred_check
    _
  $region19: #{conv_block_forward.1} parent=0 // pred_check_branch
    %20 = sbr.rel (0) target = $region21
  $region20: #{conv_block_forward.1} parent=0 // pred_region
    _
  $region21: #{conv_block_forward.1} parent=0 // pred_fallthru
    _
  // Predicated region
  $region22: #{conv_block_forward.1} parent=0 // pred_check
    _
  $region23: #{conv_block_forward.1} parent=0 // pred_check_branch
    %22 = sbr.rel (0) target = $region25
  $region24: #{conv_block_forward.1} parent=0 // pred_region
    _
  $region25: #{conv_block_forward.1} parent=0 // pred_fallthru
    _
  %v23 = vld [vmem:[%s0] sm:$0xff]
  %v24 = vld [vmem:[%s0 + $0x8] sm:$0xff]
  %v25 = vld [vmem:[%s0 + $0x10] sm:$0x3]
  %s26 = scalar_lea.vmem %s0, 24
  %v27 = vld [vmem:[%s26] sm:$0xff]
  %v28 = vld [vmem:[%s26 + $0x8] sm:$0xff]
  %v29 = vld [vmem:[%s26 + $0x10] sm:$0x3]
  %v30 = vld [vmem:[%s1] sm:$0xff]
  %v31 = vld [vmem:[%s1 + $0x8] sm:$0xff]
  %v32 = vld [vmem:[%s1 + $0x10] sm:$0xff]
  %v33 = vld [vmem:[%s1 + $0x18] sm:$0xff]
  %v34 = vld [vmem:[%s1 + $0x20] sm:$0xff]
  %v35 = vld [vmem:[%s1 + $0x28] sm:$0xff]
  %v36 = vld [vmem:[%s1 + $0x30] sm:$0xff]
  %v37 = vld [vmem:[%s1 + $0x38] sm:$0xff]
  %v38 = vld [vmem:[%s1 + $0x40] sm:$0xff]
  %vm42 = vcmask 1046528
  %v43 = vrot.slane %v23, 1
  %v44 = vrot.slane %v24, 1
  %v45 = vsel %vm42, %v43, %v44
  %v46 = vrot.slane %v25, 1
  %v47 = vsel %vm42, %v44, %v46
  %v51 = vrot.slane %v27, 1
  %v52 = vrot.slane %v28, 1
  %v53 = vsel %vm42, %v51, %v52
  %v54 = vrot.slane %v29, 1
  %v55 = vsel %vm42, %v52, %v54
  %s56 = scalar_lea.vmem %s1, 72
  %v57 = vld [vmem:[%s56] sm:$0xff]
  %v58 = vld [vmem:[%s56 + $0x8] sm:$0xff]
  %v59 = vld [vmem:[%s56 + $0x10] sm:$0xff]
  %v60 = vld [vmem:[%s56 + $0x18] sm:$0xff]
  %v61 = vld [vmem:[%s56 + $0x20] sm:$0xff]
  %v62 = vld [vmem:[%s56 + $0x28] sm:$0xff]
  %v63 = vld [vmem:[%s56 + $0x30] sm:$0xff]
  %v64 = vld [vmem:[%s56 + $0x38] sm:$0xff]
  %v65 = vld [vmem:[%s56 + $0x40] sm:$0xff]
  %vm66 = vcmask 588800
  %v67 = vsel %vm66, %v45, 0
  %v69 = vsel %vm66, %v47, 0
  %v71 = vsel %vm66, %v53, 0
  %v73 = vsel %vm66, %v55, 0
  %75 = vmatprep.subr.mxu0 0.0
  %76 = vmatpush1.msra.mxu0 0.0
  %77 = vmatprep.subr.mxu0 0.0
  %78 = vmatpush1.msra.mxu0 0.0
  %79 = vmatprep.subr.mxu0 0.0
  %80 = vmatpush1.msra.mxu0 0.0
  %81 = vmatprep.subr.mxu0 0.0
  %82 = vmatpush1.msra.mxu0 0.0
  %83 = vmatprep.subr.mxu0 0.0
  %84 = vmatpush1.msra.mxu0 0.0
  %85 = vmatprep.subr.mxu0 0.0
  %86 = vmatpush1.msra.mxu0 0.0
  %87 = vmatprep.subr.mxu0 0.0
  %88 = vmatpush1.msra.mxu0 0.0
  %89 = vmatprep.subr.mxu0 0.0
  %90 = vmatpush1.msra.mxu0 %v65
  %91 = vmatprep.subr.mxu0 0.0
  %92 = vmatpush1.msra.mxu0 %v64
  %93 = vmatprep.subr.mxu0 0.0
  %94 = vmatpush1.msra.mxu0 %v63
  %95 = vmatprep.subr.mxu0 0.0
  %96 = vmatpush1.msra.mxu0 %v62
  %97 = vmatprep.subr.mxu0 0.0
  %98 = vmatpush1.msra.mxu0 %v61
  %99 = vmatprep.subr.mxu0 0.0
  %100 = vmatpush1.msra.mxu0 %v60
  %101 = vmatprep.subr.mxu0 0.0
  %102 = vmatpush1.msra.mxu0 %v59
  %103 = vmatprep.subr.mxu0 0.0
  %104 = vmatpush1.msra.mxu0 %v58
  %105 = vmatprep.subr.mxu0 0.0
  %106 = vmatpush1.msra.mxu0 %v57
  %107 = vmatprep.subr.mxu0 0.0
  %108 = vmatpush2.msra.mxu0 0.0
  %109 = vmatprep.subr.mxu0 0.0
  %110 = vmatpush2.msra.mxu0 0.0
  %111 = vmatprep.subr.mxu0 0.0
  %112 = vmatpush2.msra.mxu0 0.0
  %113 = vmatprep.subr.mxu0 0.0
  %114 = vmatpush2.msra.mxu0 0.0
  %115 = vmatprep.subr.mxu0 0.0
  %116 = vmatpush2.msra.mxu0 0.0
  %117 = vmatprep.subr.mxu0 0.0
  %118 = vmatpush2.msra.mxu0 0.0
  %119 = vmatprep.subr.mxu0 0.0
  %120 = vmatpush2.msra.mxu0 0.0
  %121 = vmatprep.subr.mxu0 0.0
  %122 = vmatpush2.msra.mxu0 0.0
  %123 = vmatprep.subr.mxu0 0.0
  %124 = vmatpush2.msra.mxu0 0.0
  %125 = vmatprep.subr.mxu0 0.0
  %126 = vmatpush2.msra.mxu0 0.0
  %127 = vmatprep.subr.mxu0 0.0
  %128 = vmatpush2.msra.mxu0 0.0
  %129 = vmatprep.subr.mxu0 0.0
  %130 = vmatpush2.msra.mxu0 0.0
  %131 = vmatprep.subr.mxu0 0.0
  %132 = vmatpush2.msra.mxu0 0.0
  %133 = vmatprep.subr.mxu0 0.0
  %134 = vmatpush2.msra.mxu0 0.0
  %135 = vmatprep.subr.mxu0 0.0
  %136 = vmatpush2.msra.mxu0 0.0
  %137 = vmatprep.subr.mxu0 0.0
  %138 = vmatpush2.msra.mxu0 0.0
  %139 = vmatprep.mubr.f32.mxu0 0.0
  %140 = vmatmul.mubr.f32.gmra.mxu0 %v67
  %v141 = vpop.f32.mrf.mxu0
  %v142 = vadd.f32 0.0, %v141
  %v143 = vpop.f32.mrf.mxu0
  %144 = vmatprep.mubr.f32.mxu0 0.0
  %145 = vmatmul.mubr.f32.gmra.mxu0 %v69
  %v146 = vpop.f32.mrf.mxu0
  %v147 = vadd.f32 0.0, %v146
  %v148 = vpop.f32.mrf.mxu0
  %149 = vmatprep.mubr.f32.mxu0 0.0
  %150 = vmatmul.mubr.f32.gmra.mxu0 %v71
  %v151 = vpop.f32.mrf.mxu0
  %v152 = vadd.f32 0.0, %v151
  %v153 = vpop.f32.mrf.mxu0
  %154 = vmatprep.mubr.f32.mxu0 0.0
  %155 = vmatmul.mubr.f32.gmra.mxu0 %v73
  %v156 = vpop.f32.mrf.mxu0
  %v157 = vadd.f32 0.0, %v156
  %v158 = vpop.f32.mrf.mxu0
  %159 = vdwg.mxu0
  %v160 = vsel %vm66, %v23, 0
  %v162 = vsel %vm66, %v24, 0
  %v164 = vsel %vm66, %v27, 0
  %v166 = vsel %vm66, %v28, 0
  %168 = vmatprep.subr.mxu0 0.0
  %169 = vmatpush1.msra.mxu0 0.0
  %170 = vmatprep.subr.mxu0 0.0
  %171 = vmatpush1.msra.mxu0 0.0
  %172 = vmatprep.subr.mxu0 0.0
  %173 = vmatpush1.msra.mxu0 0.0
  %174 = vmatprep.subr.mxu0 0.0
  %175 = vmatpush1.msra.mxu0 0.0
  %176 = vmatprep.subr.mxu0 0.0
  %177 = vmatpush1.msra.mxu0 0.0
  %178 = vmatprep.subr.mxu0 0.0
  %179 = vmatpush1.msra.mxu0 0.0
  %180 = vmatprep.subr.mxu0 0.0
  %181 = vmatpush1.msra.mxu0 0.0
  %182 = vmatprep.subr.mxu0 0.0
  %183 = vmatpush1.msra.mxu0 %v38
  %184 = vmatprep.subr.mxu0 0.0
  %185 = vmatpush1.msra.mxu0 %v37
  %186 = vmatprep.subr.mxu0 0.0
  %187 = vmatpush1.msra.mxu0 %v36
  %188 = vmatprep.subr.mxu0 0.0
  %189 = vmatpush1.msra.mxu0 %v35
  %190 = vmatprep.subr.mxu0 0.0
  %191 = vmatpush1.msra.mxu0 %v34
  %192 = vmatprep.subr.mxu0 0.0
  %193 = vmatpush1.msra.mxu0 %v33
  %194 = vmatprep.subr.mxu0 0.0
  %195 = vmatpush1.msra.mxu0 %v32
  %196 = vmatprep.subr.mxu0 0.0
  %197 = vmatpush1.msra.mxu0 %v31
  %198 = vmatprep.subr.mxu0 0.0
  %199 = vmatpush1.msra.mxu0 %v30
  %200 = vmatprep.subr.mxu0 0.0
  %201 = vmatpush2.msra.mxu0 0.0
  %202 = vmatprep.subr.mxu0 0.0
  %203 = vmatpush2.msra.mxu0 0.0
  %204 = vmatprep.subr.mxu0 0.0
  %205 = vmatpush2.msra.mxu0 0.0
  %206 = vmatprep.subr.mxu0 0.0
  %207 = vmatpush2.msra.mxu0 0.0
  %208 = vmatprep.subr.mxu0 0.0
  %209 = vmatpush2.msra.mxu0 0.0
  %210 = vmatprep.subr.mxu0 0.0
  %211 = vmatpush2.msra.mxu0 0.0
  %212 = vmatprep.subr.mxu0 0.0
  %213 = vmatpush2.msra.mxu0 0.0
  %214 = vmatprep.subr.mxu0 0.0
  %215 = vmatpush2.msra.mxu0 0.0
  %216 = vmatprep.subr.mxu0 0.0
  %217 = vmatpush2.msra.mxu0 0.0
  %218 = vmatprep.subr.mxu0 0.0
  %219 = vmatpush2.msra.mxu0 0.0
  %220 = vmatprep.subr.mxu0 0.0
  %221 = vmatpush2.msra.mxu0 0.0
  %222 = vmatprep.subr.mxu0 0.0
  %223 = vmatpush2.msra.mxu0 0.0
  %224 = vmatprep.subr.mxu0 0.0
  %225 = vmatpush2.msra.mxu0 0.0
  %226 = vmatprep.subr.mxu0 0.0
  %227 = vmatpush2.msra.mxu0 0.0
  %228 = vmatprep.subr.mxu0 0.0
  %229 = vmatpush2.msra.mxu0 0.0
  %230 = vmatprep.subr.mxu0 0.0
  %231 = vmatpush2.msra.mxu0 0.0
  %232 = vmatprep.mubr.f32.mxu0 0.0
  %233 = vmatmul.mubr.f32.gmra.mxu0 %v160
  %v234 = vpop.f32.mrf.mxu0
  %v235 = vadd.f32 %v142, %v234
  %v236 = vpop.f32.mrf.mxu0
  %237 = vmatprep.mubr.f32.mxu0 0.0
  %238 = vmatmul.mubr.f32.gmra.mxu0 %v162
  %v239 = vpop.f32.mrf.mxu0
  %v240 = vadd.f32 %v147, %v239
  %v241 = vpop.f32.mrf.mxu0
  %242 = vmatprep.mubr.f32.mxu0 0.0
  %243 = vmatmul.mubr.f32.gmra.mxu0 %v164
  %v244 = vpop.f32.mrf.mxu0
  %v245 = vadd.f32 %v152, %v244
  %v246 = vpop.f32.mrf.mxu0
  %247 = vmatprep.mubr.f32.mxu0 0.0
  %248 = vmatmul.mubr.f32.gmra.mxu0 %v166
  %v249 = vpop.f32.mrf.mxu0
  %v250 = vadd.f32 %v157, %v249
  %v251 = vpop.f32.mrf.mxu0
  %252 = vdwg.mxu0
  %vm253 = vcmask 1045504
  %v254 = vrot.slane %v23, 2
  %v255 = vrot.slane %v24, 2
  %v256 = vsel %vm253, %v254, %v255
  %v257 = vrot.slane %v25, 2
  %v258 = vsel %vm253, %v255, %v257
  %v259 = vrot.slane %v27, 2
  %v260 = vrot.slane %v28, 2
  %v261 = vsel %vm253, %v259, %v260
  %v262 = vrot.slane %v29, 2
  %v263 = vsel %vm253, %v260, %v262
  %s264 = scalar_lea.vmem %s1, 144
  %v265 = vld [vmem:[%s264] sm:$0xff]
  %v266 = vld [vmem:[%s264 + $0x8] sm:$0xff]
  %v267 = vld [vmem:[%s264 + $0x10] sm:$0xff]
  %v268 = vld [vmem:[%s264 + $0x18] sm:$0xff]
  %v269 = vld [vmem:[%s264 + $0x20] sm:$0xff]
  %v270 = vld [vmem:[%s264 + $0x28] sm:$0xff]
  %v271 = vld [vmem:[%s264 + $0x30] sm:$0xff]
  %v272 = vld [vmem:[%s264 + $0x38] sm:$0xff]
  %v273 = vld [vmem:[%s264 + $0x40] sm:$0xff]
  %v274 = vsel %vm66, %v256, 0
  %v276 = vsel %vm66, %v258, 0
  %v278 = vsel %vm66, %v261, 0
  %v280 = vsel %vm66, %v263, 0
  %282 = vmatprep.subr.mxu0 0.0
  %283 = vmatpush1.msra.mxu0 0.0
  %284 = vmatprep.subr.mxu0 0.0
  %285 = vmatpush1.msra.mxu0 0.0
  %286 = vmatprep.subr.mxu0 0.0
  %287 = vmatpush1.msra.mxu0 0.0
  %288 = vmatprep.subr.mxu0 0.0
  %289 = vmatpush1.msra.mxu0 0.0
  %290 = vmatprep.subr.mxu0 0.0
  %291 = vmatpush1.msra.mxu0 0.0
  %292 = vmatprep.subr.mxu0 0.0
  %293 = vmatpush1.msra.mxu0 0.0
  %294 = vmatprep.subr.mxu0 0.0
  %295 = vmatpush1.msra.mxu0 0.0
  %296 = vmatprep.subr.mxu0 0.0
  %297 = vmatpush1.msra.mxu0 %v273
  %298 = vmatprep.subr.mxu0 0.0
  %299 = vmatpush1.msra.mxu0 %v272
  %300 = vmatprep.subr.mxu0 0.0
  %301 = vmatpush1.msra.mxu0 %v271
  %302 = vmatprep.subr.mxu0 0.0
  %303 = vmatpush1.msra.mxu0 %v270
  %304 = vmatprep.subr.mxu0 0.0
  %305 = vmatpush1.msra.mxu0 %v269
  %306 = vmatprep.subr.mxu0 0.0
  %307 = vmatpush1.msra.mxu0 %v268
  %308 = vmatprep.subr.mxu0 0.0
  %309 = vmatpush1.msra.mxu0 %v267
  %310 = vmatprep.subr.mxu0 0.0
  %311 = vmatpush1.msra.mxu0 %v266
  %312 = vmatprep.subr.mxu0 0.0
  %313 = vmatpush1.msra.mxu0 %v265
  %314 = vmatprep.subr.mxu0 0.0
  %315 = vmatpush2.msra.mxu0 0.0
  %316 = vmatprep.subr.mxu0 0.0
  %317 = vmatpush2.msra.mxu0 0.0
  %318 = vmatprep.subr.mxu0 0.0
  %319 = vmatpush2.msra.mxu0 0.0
  %320 = vmatprep.subr.mxu0 0.0
  %321 = vmatpush2.msra.mxu0 0.0
  %322 = vmatprep.subr.mxu0 0.0
  %323 = vmatpush2.msra.mxu0 0.0
  %324 = vmatprep.subr.mxu0 0.0
  %325 = vmatpush2.msra.mxu0 0.0
  %326 = vmatprep.subr.mxu0 0.0
  %327 = vmatpush2.msra.mxu0 0.0
  %328 = vmatprep.subr.mxu0 0.0
  %329 = vmatpush2.msra.mxu0 0.0
  %330 = vmatprep.subr.mxu0 0.0
  %331 = vmatpush2.msra.mxu0 0.0
  %332 = vmatprep.subr.mxu0 0.0
  %333 = vmatpush2.msra.mxu0 0.0
  %334 = vmatprep.subr.mxu0 0.0
  %335 = vmatpush2.msra.mxu0 0.0
  %336 = vmatprep.subr.mxu0 0.0
  %337 = vmatpush2.msra.mxu0 0.0
  %338 = vmatprep.subr.mxu0 0.0
  %339 = vmatpush2.msra.mxu0 0.0
  %340 = vmatprep.subr.mxu0 0.0
  %341 = vmatpush2.msra.mxu0 0.0
  %342 = vmatprep.subr.mxu0 0.0
  %343 = vmatpush2.msra.mxu0 0.0
  %344 = vmatprep.subr.mxu0 0.0
  %345 = vmatpush2.msra.mxu0 0.0
  %346 = vmatprep.mubr.f32.mxu0 0.0
  %347 = vmatmul.mubr.f32.gmra.mxu0 %v274
  %v348 = vpop.f32.mrf.mxu0
  %v349 = vadd.f32 0.0, %v348
  %v350 = vpop.f32.mrf.mxu0
  %351 = vmatprep.mubr.f32.mxu0 0.0
  %352 = vmatmul.mubr.f32.gmra.mxu0 %v276
  %v353 = vpop.f32.mrf.mxu0
  %v354 = vadd.f32 0.0, %v353
  %v355 = vpop.f32.mrf.mxu0
  %356 = vmatprep.mubr.f32.mxu0 0.0
  %357 = vmatmul.mubr.f32.gmra.mxu0 %v278
  %v358 = vpop.f32.mrf.mxu0
  %v359 = vadd.f32 0.0, %v358
  %v360 = vpop.f32.mrf.mxu0
  %361 = vmatprep.mubr.f32.mxu0 0.0
  %362 = vmatmul.mubr.f32.gmra.mxu0 %v280
  %v363 = vpop.f32.mrf.mxu0
  %v364 = vadd.f32 0.0, %v363
  %v365 = vpop.f32.mrf.mxu0
  %366 = vdwg.mxu0
  %v367 = vadd.f32 %v235, %v349
  %v368 = vadd.f32 %v240, %v354
  %v369 = vadd.f32 %v245, %v359
  %v370 = vadd.f32 %v250, %v364
  %v371 = vld [vmem:[%s2] sm:$0x1]
  %v373 = vlaneseq
  %v374 = vshrl.u32 %v373, 7
  %v375 = vsub.s32 0, %v374
  %v376 = vrot.slane %v371, %v375
  %v378 = vadd.f32 %v367, %v376
  %v379 = vadd.f32 %v368, %v376
  %v380 = vadd.f32 %v369, %v376
  %v381 = vadd.f32 %v370, %v376
  %v382 = vmax.f32 %v378, 0.0
  %v383 = vmax.f32 %v379, 0.0
  %v384 = vmax.f32 %v380, 0.0
  %v385 = vmax.f32 %v381, 0.0
  %v386 = vadd.f32 %v382, %v383
  %v387 = vadd.f32 %v386, %v384
  %v388 = vadd.f32 %v387, %v385
  %v389 = vrot.slane %v388, 4
  %v390 = vadd.f32 %v388, %v389
  %v391 = vrot.slane %v390, 2
  %v392 = vadd.f32 %v390, %v391
  %v393 = vrot.slane %v392, 1
  %v394 = vadd.f32 %v392, %v393
  %v395 = vld [vmem:[%s5] sm:$0xff]
  %v396 = vld [vmem:[%s5 + $0x8] sm:$0xff]
  %v397 = vld [vmem:[%s5 + $0x10] sm:$0xff]
  %v398 = vld [vmem:[%s5 + $0x18] sm:$0xff]
  %v399 = vld [vmem:[%s5 + $0x20] sm:$0xff]
  %v400 = vld [vmem:[%s5 + $0x28] sm:$0xff]
  %v401 = vld [vmem:[%s5 + $0x30] sm:$0xff]
  %v402 = vld [vmem:[%s5 + $0x38] sm:$0xff]
  %v403 = vld [vmem:[%s5 + $0x40] sm:$0xff]
  %v404 = vld [vmem:[%s5 + $0x48] sm:$0xff]
  %v405 = vld [vmem:[%s5 + $0x50] sm:$0xff]
  %v406 = vld [vmem:[%s5 + $0x58] sm:$0xff]
  %v407 = vld [vmem:[%s5 + $0x60] sm:$0xff]
  %v408 = vld [vmem:[%s5 + $0x68] sm:$0xff]
  %v409 = vld [vmem:[%s5 + $0x70] sm:$0xff]
  %v410 = vld [vmem:[%s5 + $0x78] sm:$0xff]
  %411 = vmatprep.subr.mxu0 0.0
  %412 = vmatpush1.msra.mxu0 %v410
  %413 = vmatprep.subr.mxu0 0.0
  %414 = vmatpush1.msra.mxu0 %v409
  %415 = vmatprep.subr.mxu0 0.0
  %416 = vmatpush1.msra.mxu0 %v408
  %417 = vmatprep.subr.mxu0 0.0
  %418 = vmatpush1.msra.mxu0 %v407
  %419 = vmatprep.subr.mxu0 0.0
  %420 = vmatpush1.msra.mxu0 %v406
  %421 = vmatprep.subr.mxu0 0.0
  %422 = vmatpush1.msra.mxu0 %v405
  %423 = vmatprep.subr.mxu0 0.0
  %424 = vmatpush1.msra.mxu0 %v404
  %425 = vmatprep.subr.mxu0 0.0
  %426 = vmatpush1.msra.mxu0 %v403
  %427 = vmatprep.subr.mxu0 0.0
  %428 = vmatpush1.msra.mxu0 %v402
  %429 = vmatprep.subr.mxu0 0.0
  %430 = vmatpush1.msra.mxu0 %v401
  %431 = vmatprep.subr.mxu0 0.0
  %432 = vmatpush1.msra.mxu0 %v400
  %433 = vmatprep.subr.mxu0 0.0
  %434 = vmatpush1.msra.mxu0 %v399
  %435 = vmatprep.subr.mxu0 0.0
  %436 = vmatpush1.msra.mxu0 %v398
  %437 = vmatprep.subr.mxu0 0.0
  %438 = vmatpush1.msra.mxu0 %v397
  %439 = vmatprep.subr.mxu0 0.0
  %440 = vmatpush1.msra.mxu0 %v396
  %441 = vmatprep.subr.mxu0 0.0
  %442 = vmatpush1.msra.mxu0 %v395
  %443 = vmatprep.subr.mxu0 0.0
  %444 = vmatpush2.msra.mxu0 0.0
  %445 = vmatprep.subr.mxu0 0.0
  %446 = vmatpush2.msra.mxu0 0.0
  %447 = vmatprep.subr.mxu0 0.0
  %448 = vmatpush2.msra.mxu0 0.0
  %449 = vmatprep.subr.mxu0 0.0
  %450 = vmatpush2.msra.mxu0 0.0
  %451 = vmatprep.subr.mxu0 0.0
  %452 = vmatpush2.msra.mxu0 0.0
  %453 = vmatprep.subr.mxu0 0.0
  %454 = vmatpush2.msra.mxu0 0.0
  %455 = vmatprep.subr.mxu0 0.0
  %456 = vmatpush2.msra.mxu0 0.0
  %457 = vmatprep.subr.mxu0 0.0
  %458 = vmatpush2.msra.mxu0 0.0
  %459 = vmatprep.subr.mxu0 0.0
  %460 = vmatpush2.msra.mxu0 0.0
  %461 = vmatprep.subr.mxu0 0.0
  %462 = vmatpush2.msra.mxu0 0.0
  %463 = vmatprep.subr.mxu0 0.0
  %464 = vmatpush2.msra.mxu0 0.0
  %465 = vmatprep.subr.mxu0 0.0
  %466 = vmatpush2.msra.mxu0 0.0
  %467 = vmatprep.subr.mxu0 0.0
  %468 = vmatpush2.msra.mxu0 0.0
  %469 = vmatprep.subr.mxu0 0.0
  %470 = vmatpush2.msra.mxu0 0.0
  %471 = vmatprep.subr.mxu0 0.0
  %472 = vmatpush2.msra.mxu0 0.0
  %473 = vmatprep.subr.mxu0 0.0
  %474 = vmatpush2.msra.mxu0 0.0
  %475 = vmatprep.mubr.f32.mxu0 0.0
  %476 = vmatmul.mubr.f32.gmra.mxu0 %v394
  %v477 = vpop.f32.mrf.mxu0
  %v478 = vadd.f32 0.0, %v477
  %v479 = vpop.f32.mrf.mxu0
  %480 = vdwg.mxu0
  %v481 = vmul.f32 %v478, 0.001953125
  %v482 = vlaneseq
  %v483 = vshrl.u32 %v482, 7
  %v484 = vsub.s32 0, %v483
  %v485 = vrot.slane %v481, %v484
  %v486 = vsub.f32 %v382, %v485
  %v487 = vsub.f32 %v383, %v485
  %v488 = vsub.f32 %v384, %v485
  %v489 = vsub.f32 %v385, %v485
  %v490 = vmul.f32 %v486, %v486
  %v491 = vmul.f32 %v487, %v487
  %v492 = vmul.f32 %v488, %v488
  %v493 = vmul.f32 %v489, %v489
  %v494 = vadd.f32 %v490, %v491
  %v495 = vadd.f32 %v494, %v492
  %v496 = vadd.f32 %v495, %v493
  %v497 = vrot.slane %v496, 4
  %v498 = vadd.f32 %v496, %v497
  %v499 = vrot.slane %v498, 2
  %v500 = vadd.f32 %v498, %v499
  %v501 = vrot.slane %v500, 1
  %v502 = vadd.f32 %v500, %v501
  %503 = vmatprep.subr.mxu0 0.0
  %504 = vmatpush1.msra.mxu0 %v410
  %505 = vmatprep.subr.mxu0 0.0
  %506 = vmatpush1.msra.mxu0 %v409
  %507 = vmatprep.subr.mxu0 0.0
  %508 = vmatpush1.msra.mxu0 %v408
  %509 = vmatprep.subr.mxu0 0.0
  %510 = vmatpush1.msra.mxu0 %v407
  %511 = vmatprep.subr.mxu0 0.0
  %512 = vmatpush1.msra.mxu0 %v406
  %513 = vmatprep.subr.mxu0 0.0
  %514 = vmatpush1.msra.mxu0 %v405
  %515 = vmatprep.subr.mxu0 0.0
  %516 = vmatpush1.msra.mxu0 %v404
  %517 = vmatprep.subr.mxu0 0.0
  %518 = vmatpush1.msra.mxu0 %v403
  %519 = vmatprep.subr.mxu0 0.0
  %520 = vmatpush1.msra.mxu0 %v402
  %521 = vmatprep.subr.mxu0 0.0
  %522 = vmatpush1.msra.mxu0 %v401
  %523 = vmatprep.subr.mxu0 0.0
  %524 = vmatpush1.msra.mxu0 %v400
  %525 = vmatprep.subr.mxu0 0.0
  %526 = vmatpush1.msra.mxu0 %v399
  %527 = vmatprep.subr.mxu0 0.0
  %528 = vmatpush1.msra.mxu0 %v398
  %529 = vmatprep.subr.mxu0 0.0
  %530 = vmatpush1.msra.mxu0 %v397
  %531 = vmatprep.subr.mxu0 0.0
  %532 = vmatpush1.msra.mxu0 %v396
  %533 = vmatprep.subr.mxu0 0.0
  %534 = vmatpush1.msra.mxu0 %v395
  %535 = vmatprep.subr.mxu0 0.0
  %536 = vmatpush2.msra.mxu0 0.0
  %537 = vmatprep.subr.mxu0 0.0
  %538 = vmatpush2.msra.mxu0 0.0
  %539 = vmatprep.subr.mxu0 0.0
  %540 = vmatpush2.msra.mxu0 0.0
  %541 = vmatprep.subr.mxu0 0.0
  %542 = vmatpush2.msra.mxu0 0.0
  %543 = vmatprep.subr.mxu0 0.0
  %544 = vmatpush2.msra.mxu0 0.0
  %545 = vmatprep.subr.mxu0 0.0
  %546 = vmatpush2.msra.mxu0 0.0
  %547 = vmatprep.subr.mxu0 0.0
  %548 = vmatpush2.msra.mxu0 0.0
  %549 = vmatprep.subr.mxu0 0.0
  %550 = vmatpush2.msra.mxu0 0.0
  %551 = vmatprep.subr.mxu0 0.0
  %552 = vmatpush2.msra.mxu0 0.0
  %553 = vmatprep.subr.mxu0 0.0
  %554 = vmatpush2.msra.mxu0 0.0
  %555 = vmatprep.subr.mxu0 0.0
  %556 = vmatpush2.msra.mxu0 0.0
  %557 = vmatprep.subr.mxu0 0.0
  %558 = vmatpush2.msra.mxu0 0.0
  %559 = vmatprep.subr.mxu0 0.0
  %560 = vmatpush2.msra.mxu0 0.0
  %561 = vmatprep.subr.mxu0 0.0
  %562 = vmatpush2.msra.mxu0 0.0
  %563 = vmatprep.subr.mxu0 0.0
  %564 = vmatpush2.msra.mxu0 0.0
  %565 = vmatprep.subr.mxu0 0.0
  %566 = vmatpush2.msra.mxu0 0.0
  %567 = vmatprep.mubr.f32.mxu0 0.0
  %568 = vmatmul.mubr.f32.gmra.mxu0 %v502
  %v569 = vpop.f32.mrf.mxu0
  %v570 = vadd.f32 0.0, %v569
  %v571 = vpop.f32.mrf.mxu0
  %572 = vdwg.mxu0
  %v573 = vmul.f32 %v570, 0.001953125
  %v574 = vld [vmem:[%s3] sm:$0x1]
  %v575 = vadd.f32 %v573, 1e-05
  %v576 = vrsqrt.pop %v575
  %v577 = vmul.f32 %v574, %v576
  %v579 = vlaneseq
  %v580 = vshrl.u32 %v579, 7
  %v581 = vsub.s32 0, %v580
  %v582 = vrot.slane %v577, %v581
  %v584 = vmul.f32 %v486, %v582
  %v585 = vmul.f32 %v487, %v582
  %v586 = vmul.f32 %v488, %v582
  %v587 = vmul.f32 %v489, %v582
  %v588 = vld [vmem:[%s4] sm:$0x1]
  %v590 = vlaneseq
  %v591 = vshrl.u32 %v590, 7
  %v592 = vsub.s32 0, %v591
  %v593 = vrot.slane %v588, %v592
  %v595 = vadd.f32 %v584, %v593
  %v596 = vadd.f32 %v585, %v593
  %v597 = vadd.f32 %v586, %v593
  %v598 = vadd.f32 %v587, %v593
  %599 = vst [vmem:[%s6] sm:$0xff] %v595
  %600 = vst [vmem:[%s6 + $0x8] sm:$0xff] %v596
  %601 = vst [vmem:[%s6 + $0x10] sm:$0xff] %v597
  %602 = vst [vmem:[%s6 + $0x18] sm:$0xff] %v598
  // Predicated region
  $region26: #{conv_block_forward.1} parent=0 // pred_check
    _
  $region27: #{conv_block_forward.1} parent=0 // pred_check_branch
    %604 = sbr.rel (0) target = $region29
  $region28: #{conv_block_forward.1} parent=0 // pred_region
    _
  $region29: #{conv_block_forward.1} parent=0 // pred_fallthru
    _
  // Predicated region
  $region30: #{conv_block_forward.1} parent=0 // pred_check
    _
  $region31: #{conv_block_forward.1} parent=0 // pred_check_branch
    %606 = sbr.rel (0) target = $region33
  $region32: #{conv_block_forward.1} parent=0 // pred_region
    _
  $region33: #{conv_block_forward.1} parent=0 // pred_fallthru
    _

</llo_original>
